<compile_context>
chip_gen: v5e
topology: v5e:2x2
jax: 0.10.0
libtpu: 0.0.40
codegen_flags: <defaults>
</compile_context>

<pallas_src>
import jax
import jax.numpy as jnp
from jax.experimental import pallas as pl
from jax.experimental.pallas import tpu as pltpu

SUBLANE = 8
BM_CAP = 2048


def _round_up(n, m):
    return ((n + m - 1) // m) * m


def linear_kernel(x_ref, w_ref, b_ref, o_ref):
    # Single MXU push (K=10 <= 128) + VPU bias add in the f32 accumulator.
    acc = jnp.dot(x_ref[...], w_ref[...], preferred_element_type=jnp.float32)
    o_ref[...] = (acc + b_ref[...]).astype(o_ref.dtype)


def pack_params(weight, bias):
    """weight: PyTorch layout (out_features, in_features); bias: (out_features,).

    Returns (w_t, b2) = (weight.T of shape (in, out), bias of shape (1, out)).
    No zero-padding: logical widths go straight into the kernel.  Done once at
    init; parameters are static.
    """
    return weight.T, bias.reshape(1, -1)


def _pick_bm(B):
    if B <= SUBLANE:
        return B  # block dim == full array dim -> always a legal block
    # >= 2 grid steps (so v7x can shard the parallel axis across both TCs),
    # tile a multiple of 8 sublanes, capped (tiles stay tiny: K=10, N=20).
    bm = _round_up(pl.cdiv(B, 2), SUBLANE)
    return min(bm, BM_CAP)


@jax.jit
def linear_pallas(x, w_t, b2):
    """x: (B, in) f32; w_t: (in, out); b2: (1, out). Returns (B, out)."""
    B, K = x.shape
    _, N = w_t.shape
    bm = _pick_bm(B)

    return pl.pallas_call(
        linear_kernel,
        out_shape=jax.ShapeDtypeStruct((B, N), x.dtype),
        grid_spec=pltpu.PrefetchScalarGridSpec(
            num_scalar_prefetch=0,
            grid=(pl.cdiv(B, bm),),
            in_specs=[
                pl.BlockSpec((bm, K), lambda i: (i, 0)),
                pl.BlockSpec((K, N), lambda i: (0, 0)),   # weight: resident
                pl.BlockSpec((1, N), lambda i: (0, 0)),   # bias:   resident
            ],
            out_specs=pl.BlockSpec((bm, N), lambda i: (i, 0)),
        ),
        compiler_params=pltpu.CompilerParams(
            dimension_semantics=("parallel",),
        ),
    )(x, w_t, b2)


if __name__ == "__main__":
    key = jax.random.PRNGKey(0)
    k_x, k_w, k_b, k_x2 = jax.random.split(key, 4)

    B, IN, OUT = 8, 10, 20

    # Deterministic init mimicking nn.Linear default: U(-1/sqrt(IN), 1/sqrt(IN))
    bound = 1.0 / (IN ** 0.5)
    weight = jax.random.uniform(k_w, (OUT, IN), jnp.float32, -bound, bound)  # (out, in)
    bias = jax.random.uniform(k_b, (OUT,), jnp.float32, -bound, bound)
    x = jax.random.normal(k_x, (B, IN), jnp.float32)

    # One-time parameter packing (transpose + reshape only; no padding).
    w_t, b2 = pack_params(weight, bias)

    y = linear_pallas(x, w_t, b2)
    jax.block_until_ready(y)

    # Reference: x @ W^T + b
    y_ref = x @ weight.T + bias
    assert y.shape == (B, OUT)
    assert jnp.allclose(y, y_ref, atol=1e-5, rtol=1e-5)

    # Also exercise the multi-step grid (v7x dual-TC path) with a partial
    # trailing block to confirm rows beyond B are masked on store.
    x2 = jax.random.normal(k_x2, (20, IN), jnp.float32)
    y2 = linear_pallas(x2, w_t, b2)
    jax.block_until_ready(y2)
    assert y2.shape == (20, OUT)
    assert jnp.allclose(y2, x2 @ weight.T + bias, atol=1e-5, rtol=1e-5)

    print("KERNEL_OK")
</pallas_src>

<mosaic_0001>
module attributes {stable_mosaic.version = 11 : i64} {
  func.func @linear_kernel(%arg0: i32, %arg1: memref<8x10xf32, #tpu.memory_space<vmem>>, %arg2: memref<10x20xf32, #tpu.memory_space<vmem>>, %arg3: memref<1x20xf32, #tpu.memory_space<vmem>>, %arg4: memref<8x20xf32, #tpu.memory_space<vmem>>) attributes {dimension_semantics = [#tpu.dimension_semantics<parallel>], iteration_bounds = array<i64: 1>, scalar_prefetch = 0 : i64, scratch_operands = 0 : i64, tpu.core_type = #tpu.core_type<tc>, window_params = [{transform_indices = @transform_0, window_bounds = array<i64: 8, 10>}, {pipeline_mode = #tpu.pipeline_mode<synchronous>, transform_indices = @transform_1, window_bounds = array<i64: 10, 20>}, {pipeline_mode = #tpu.pipeline_mode<synchronous>, transform_indices = @transform_2, window_bounds = array<i64: 1, 20>}, {transform_indices = @transform_3, window_bounds = array<i64: 8, 20>}]} {
    %c0 = arith.constant 0 : index
    %c0_0 = arith.constant 0 : index
    %0 = vector.load %arg1[%c0, %c0_0] : memref<8x10xf32, #tpu.memory_space<vmem>>, vector<8x10xf32>
    %c0_1 = arith.constant 0 : index
    %c0_2 = arith.constant 0 : index
    %1 = vector.load %arg2[%c0_1, %c0_2] : memref<10x20xf32, #tpu.memory_space<vmem>>, vector<10x20xf32>
    %cst = arith.constant dense<0.000000e+00> : vector<8x20xf32>
    %2 = tpu.matmul %0, %1, %cst {dimension_numbers = #tpu.dot_dimension_numbers<[1], [0], [0], [1], [0, 0, 1, 1], [], []>} : vector<8x10xf32>, vector<10x20xf32>, vector<8x20xf32> -> vector<8x20xf32>
    %c0_3 = arith.constant 0 : index
    %c0_4 = arith.constant 0 : index
    %3 = vector.load %arg3[%c0_3, %c0_4] : memref<1x20xf32, #tpu.memory_space<vmem>>, vector<1x20xf32>
    %4 = vector.broadcast %3 : vector<1x20xf32> to vector<8x20xf32>
    %5 = arith.addf %2, %4 : vector<8x20xf32>
    %c0_5 = arith.constant 0 : index
    %c0_6 = arith.constant 0 : index
    %6 = vector.load %arg4[%c0_5, %c0_6] : memref<8x20xf32, #tpu.memory_space<vmem>>, vector<8x20xf32>
    tpu.vector_store %arg4[%c0_5, %c0_6], %5 {strides = array<i32>} : memref<8x20xf32, #tpu.memory_space<vmem>>, vector<8x20xf32>,
    return
  }
  func.func @transform_0(%arg0: i32) -> (i32, i32) {
    %c0_i32 = arith.constant 0 : i32
    %c0_i32_0 = arith.constant 0 : i32
    return %arg0, %c0_i32 : i32, i32
  }
  func.func @transform_1(%arg0: i32) -> (i32, i32) {
    %c0_i32 = arith.constant 0 : i32
    %c0_i32_0 = arith.constant 0 : i32
    %c0_i32_1 = arith.constant 0 : i32
    return %c0_i32, %c0_i32_0 : i32, i32
  }
  func.func @transform_2(%arg0: i32) -> (i32, i32) {
    %c0_i32 = arith.constant 0 : i32
    %c0_i32_0 = arith.constant 0 : i32
    %c0_i32_1 = arith.constant 0 : i32
    return %c0_i32, %c0_i32_0 : i32, i32
  }
  func.func @transform_3(%arg0: i32) -> (i32, i32) {
    %c0_i32 = arith.constant 0 : i32
    %c0_i32_0 = arith.constant 0 : i32
    return %arg0, %c0_i32 : i32, i32
  }
}

</mosaic_0001>

<llo_original>
// kernel: linear_pallas.1
$region0: #{linear_pallas.1}
  #allocation0 [shape = 'u32[]', space=smem, size = 0x4, offset = 0x4, fixed_abs, tag = 'smem constant byte address 0x4 - core index']
  #allocation1 [shape = 'u32[72,128]{1,0:T(1,128)}', space=vmem, size = 0x9000, scoped, tag = 'internal scratch']
  %s0 = inlined_call_operand.hbm [shape: f32[8,10], index: 0, kind: input, shape index: {}]
  %s1 = inlined_call_operand.hbm [shape: f32[10,20], index: 1, kind: input, shape index: {}]
  %s2 = inlined_call_operand.vmem [shape: f32[1,20], index: 2, kind: input, shape index: {}]
  %s3 = inlined_call_operand.hbm [shape: f32[8,20], index: 3, kind: output, shape index: {}]
  %s4 = sld [smem:[#allocation0]]
  $region30: #{linear_pallas.1} parent=0
    _
  %s6 = ssub.s32 1, %s4
  %s7 = scalar_select 0, %s6, %s4
  $region1: #{linear_pallas.1} parent=0
    #allocation2 [shape = 'u8[4096]{0}', space=vmem, size = 0x1000, scoped, tag = 'input window, operand 0, single buffered']
    #allocation3 [shape = 's32[1]{0}', space=sflag, size = 0x4, scoped, tag = 'scoped memory for linear_pallas.1']
    #allocation4 [shape = 's32[1]{0}', space=sflag, size = 0x4, scoped, tag = 'scoped memory for linear_pallas.1']
    #allocation5 [shape = 'u8[8192]{0}', space=vmem, size = 0x2000, scoped, tag = 'input window, operand 1, single buffered']
    #allocation6 [shape = 's32[1]{0}', space=sflag, size = 0x4, scoped, tag = 'scoped memory for linear_pallas.1']
    #allocation7 [shape = 'u8[4096]{0}', space=vmem, size = 0x1000, scoped, tag = 'output window, operand 0, single buffered']
    %8 = vsyncpa [#allocation3], 0
    %9 = vsyncpa [#allocation6], 0
    %10 = vsyncpa [#allocation4], 0
    // Predicated region
    $region2: #{linear_pallas.1} parent=1 // pred_check
      _
    $region3: #{linear_pallas.1} parent=1 // pred_check_branch
      %12 = sbr.rel (0) target = $region5
    $region4: #{linear_pallas.1} parent=1 // pred_region
      %14 = vsyncadd [#allocation3], 0
      %s16 = sshll.u32 %s0, 4
      %s17 = int_to_ptr.hbm [resolvable:$true] %s16
      %s18 = sshll.u32 [#allocation2], 4
      %s19 = int_to_ptr.vmem [resolvable:$true] %s18
      %21 = dma.hbm_to_vmem [thread:$0]  %s17, 128, %s19, [#allocation3]
    $region5: #{linear_pallas.1} parent=1 // pred_fallthru
      _
    // Predicated region
    $region6: #{linear_pallas.1} parent=1 // pred_check
      _
    $region7: #{linear_pallas.1} parent=1 // pred_check_branch
      %23 = sbr.rel (0) target = $region9
    $region8: #{linear_pallas.1} parent=1 // pred_region
      %25 = vsyncadd [#allocation6], 0
      %s26 = sshll.u32 %s1, 4
      %s27 = int_to_ptr.hbm [resolvable:$true] %s26
      %s28 = sshll.u32 [#allocation5], 4
      %s29 = int_to_ptr.vmem [resolvable:$true] %s28
      %34 = dma.hbm_to_vmem [thread:$0]  %s27, 256, %s29, [#allocation6], 128, 128, 8
    $region9: #{linear_pallas.1} parent=1 // pred_fallthru
      _
    // Predicated region
    $region10: #{linear_pallas.1} parent=1 // pred_check
      _
    $region11: #{linear_pallas.1} parent=1 // pred_check_branch
      %36 = sbr.rel (0) target = $region13
    $region12: #{linear_pallas.1} parent=1 // pred_region
      _
    $region13: #{linear_pallas.1} parent=1 // pred_fallthru
      _
    // Predicated region
    $region14: #{linear_pallas.1} parent=1 // pred_check
      _
    $region15: #{linear_pallas.1} parent=1 // pred_check_branch
      %38 = sbr.rel (0) target = $region17
    $region16: #{linear_pallas.1} parent=1 // pred_region
      %40 = dma.done [#allocation3], 128
    $region17: #{linear_pallas.1} parent=1 // pred_fallthru
      _
    // Predicated region
    $region18: #{linear_pallas.1} parent=1 // pred_check
      _
    $region19: #{linear_pallas.1} parent=1 // pred_check_branch
      %42 = sbr.rel (0) target = $region21
    $region20: #{linear_pallas.1} parent=1 // pred_region
      %44 = dma.done [#allocation6], 256
    $region21: #{linear_pallas.1} parent=1 // pred_fallthru
      _
    %v45 = vld [vmem:[#allocation2] sm:$0xff]
    %v46 = vld [vmem:[#allocation5] sm:$0xff]
    %v47 = vld [vmem:[#allocation5 + $0x8] sm:$0x3]
    %v48 = vld [vmem:[%s2] sm:$0x1]
    %v50 = vperm.slane %v48, 0
    %vm52 = vcmask 80896
    %v54 = vsel %vm52, %v45, 0
    %vm56 = vcmask 1041408
    %v58 = vsel %vm56, %v47, 0
    %60 = vmatpush.msra.mxu0 0.0
    %61 = vmatpush.msra.mxu0 0.0
    %62 = vmatpush.msra.mxu0 0.0
    %63 = vmatpush.msra.mxu0 0.0
    %64 = vmatpush.msra.mxu0 0.0
    %65 = vmatpush.msra.mxu0 0.0
    %66 = vmatpush.msra.mxu0 0.0
    %67 = vmatpush.msra.mxu0 0.0
    %68 = vmatpush.msra.mxu0 0.0
    %69 = vmatpush.msra.mxu0 0.0
    %70 = vmatpush.msra.mxu0 0.0
    %71 = vmatpush.msra.mxu0 0.0
    %72 = vmatpush.msra.mxu0 0.0
    %73 = vmatpush.msra.mxu0 0.0
    %74 = vmatpush.msra.mxu0 %v58
    %75 = vmatpush.msra.mxu0 %v46
    %76 = vmatmul.f32.gmra.mxu0 %v54
    %v77 = vpop.f32.mrf.mxu0
    %v78 = vadd.f32 %v50, %v77
    %79 = vdwg.mxu0
    %vm80 = vcmask 162816
    %81 = vst.msk [vmem:[#allocation7] sm:$0xff] %vm80, %v78
    // Predicated region
    $region22: #{linear_pallas.1} parent=1 // pred_check
      _
    $region23: #{linear_pallas.1} parent=1 // pred_check_branch
      %83 = sbr.rel (0) target = $region25
    $region24: #{linear_pallas.1} parent=1 // pred_region
      %85 = vsyncadd [#allocation4], 0
      %s87 = sshll.u32 [#allocation7], 4
      %s88 = int_to_ptr.vmem [resolvable:$true] %s87
      %s89 = sshll.u32 %s3, 4
      %s90 = int_to_ptr.hbm [resolvable:$true] %s89
      %92 = dma.vmem_to_hbm [thread:$0]  %s88, 128, %s90, [#allocation4]
    $region25: #{linear_pallas.1} parent=1 // pred_fallthru
      _
    // Predicated region
    $region26: #{linear_pallas.1} parent=1 // pred_check
      _
    $region27: #{linear_pallas.1} parent=1 // pred_check_branch
      %94 = sbr.rel (0) target = $region29
    $region28: #{linear_pallas.1} parent=1 // pred_region
      %96 = dma.done [#allocation4], 128
    $region29: #{linear_pallas.1} parent=1 // pred_fallthru
      _
    %97 = vsyncpa [#allocation3], 1
    %98 = vsyncpa [#allocation6], 1
    %99 = vsyncpa [#allocation4], 1

</llo_original>
